<compile_context>
chip_gen: v6e
topology: v6e:2x2x1
jax: 0.10.0
libtpu: 0.0.40
codegen_flags: <defaults>
</compile_context>

<pallas_src>
import functools

import jax
import jax.numpy as jnp
from jax.experimental import pallas as pl
from jax.experimental.pallas import tpu as pltpu


def _linear_kernel(x_ref, w_ref, o_ref, *, compute_dtype):
    # x_ref: (tm, K)  tile of flattened input rows, native dtype (cast here)
    # w_ref: (K, E)   full weight, pre-transposed + pre-cast in the wrapper
    # o_ref: (tm, E)  output tile (E equals the full last dim)
    x = x_ref[...].astype(compute_dtype)
    o_ref[...] = jnp.dot(
        x, w_ref[...], preferred_element_type=jnp.float32
    ).astype(o_ref.dtype)


def _round_up(n, m):
    return (n + m - 1) // m * m


def embedding_net_forward(x, weight, *, tm=1024, compute_dtype=jnp.bfloat16,
                          out_dtype=None, force_pallas=False):
    """Pallas equivalent of EmbeddingNet.forward.

    x:      (..., node_dim)
    weight: (embedding_dim, node_dim)  -- PyTorch nn.Linear layout, bias=False
    returns (..., embedding_dim), dtype of x (or out_dtype if given)
    """
    node_dim = x.shape[-1]
    embedding_dim = weight.shape[0]
    lead_shape = x.shape[:-1]
    out_dtype = x.dtype if out_dtype is None else out_dtype

    x2d = x.reshape(-1, node_dim)  # (M, K)
    M = x2d.shape[0]

    # Tiny problems: per-step overhead (~0.35 us) dwarfs the ~2*M*K*E flops;
    # XLA's fused einsum wins.  The demo forces the Pallas path explicitly.
    if not force_pallas and M * embedding_dim < 512 * 128:
        out = jnp.einsum("mk,ek->me", x2d, weight)
        return out.astype(out_dtype).reshape(*lead_shape, embedding_dim)

    # One-time, negligible-size weight prep: (E, K) -> (K, E) in compute dtype.
    wt = weight.T.astype(compute_dtype)

    # Row tile: large to amortize grid-step overhead, clamped so there are
    # always >= 2 row blocks (v7x megacore), and kept a multiple of 8.
    tm_eff = min(tm, _round_up(pl.cdiv(M, 2), 8))
    grid_m = pl.cdiv(M, tm_eff)  # ragged last block handled by Pallas masking

    kernel = functools.partial(_linear_kernel, compute_dtype=compute_dtype)

    out = pl.pallas_call(
        kernel,
        out_shape=jax.ShapeDtypeStruct((M, embedding_dim), out_dtype),
        grid_spec=pltpu.PrefetchScalarGridSpec(
            num_scalar_prefetch=0,
            grid=(grid_m,),
            in_specs=[
                pl.BlockSpec((tm_eff, node_dim), lambda i: (i, 0)),
                pl.BlockSpec((node_dim, embedding_dim), lambda i: (0, 0)),
            ],
            out_specs=pl.BlockSpec((tm_eff, embedding_dim), lambda i: (i, 0)),
        ),
        compiler_params=pltpu.CompilerParams(
            dimension_semantics=("parallel",),
        ),
    )(x2d, wt)

    return out.reshape(*lead_shape, embedding_dim)


if __name__ == "__main__":
    # Small shapes consistent with the module: node_dim -> embedding_dim linear
    batch, seq = 2, 8
    node_dim, embedding_dim = 16, 64

    key = jax.random.PRNGKey(0)
    kx, kw, kx2 = jax.random.split(key, 3)

    # nn.Linear-style init: U(-1/sqrt(node_dim), 1/sqrt(node_dim))
    bound = 1.0 / (node_dim ** 0.5)
    weight = jax.random.uniform(
        kw, (embedding_dim, node_dim), dtype=jnp.float32,
        minval=-bound, maxval=bound,
    )
    x = jax.random.normal(kx, (batch, seq, node_dim), dtype=jnp.float32)

    # Force the Pallas path so the kernel actually runs at this toy size.
    h_em = embedding_net_forward(x, weight, force_pallas=True)
    jax.block_until_ready(h_em)

    ref = jnp.einsum("bsk,ek->bse", x, weight)
    assert h_em.shape == (batch, seq, embedding_dim)
    # bf16 compute with f32 accumulation -> relaxed tolerance.
    assert jnp.allclose(h_em, ref, atol=2e-2, rtol=2e-2)

    # Second check: M=210 exercises the ragged (unpadded) last grid block.
    x2 = jax.random.normal(kx2, (3, 70, node_dim), dtype=jnp.float32)
    h2 = embedding_net_forward(x2, weight, force_pallas=True)
    jax.block_until_ready(h2)
    ref2 = jnp.einsum("bsk,ek->bse", x2, weight)
    assert h2.shape == (3, 70, embedding_dim)
    assert jnp.allclose(h2, ref2, atol=2e-2, rtol=2e-2)

    # Third check: bit-faithful f32 compute path, tight tolerance.
    h3 = embedding_net_forward(x2, weight, compute_dtype=jnp.float32,
                               force_pallas=True)
    jax.block_until_ready(h3)
    assert jnp.allclose(h3, ref2, atol=1e-5, rtol=1e-5)

    print("KERNEL_OK")
</pallas_src>

<mosaic_0001>
module attributes {stable_mosaic.version = 11 : i64} {
  func.func @_linear_kernel(%arg0: i32, %arg1: memref<8x16xf32, #tpu.memory_space<vmem>>, %arg2: memref<16x64xbf16, #tpu.memory_space<vmem>>, %arg3: memref<8x64xf32, #tpu.memory_space<vmem>>) attributes {dimension_semantics = [#tpu.dimension_semantics<parallel>], iteration_bounds = array<i64: 2>, scalar_prefetch = 0 : i64, scratch_operands = 0 : i64, tpu.core_type = #tpu.core_type<tc>, window_params = [{transform_indices = @transform_0, window_bounds = array<i64: 8, 16>}, {pipeline_mode = #tpu.pipeline_mode<synchronous>, transform_indices = @transform_1, window_bounds = array<i64: 16, 64>}, {transform_indices = @transform_2, window_bounds = array<i64: 8, 64>}]} {
    %c0 = arith.constant 0 : index
    %c0_0 = arith.constant 0 : index
    %0 = vector.load %arg1[%c0, %c0_0] : memref<8x16xf32, #tpu.memory_space<vmem>>, vector<8x16xf32>
    %1 = arith.truncf %0 : vector<8x16xf32> to vector<8x16xbf16>
    %c0_1 = arith.constant 0 : index
    %c0_2 = arith.constant 0 : index
    %2 = vector.load %arg2[%c0_1, %c0_2] : memref<16x64xbf16, #tpu.memory_space<vmem>>, vector<16x64xbf16>
    %cst = arith.constant dense<0.000000e+00> : vector<8x64xf32>
    %3 = tpu.matmul %1, %2, %cst {dimension_numbers = #tpu.dot_dimension_numbers<[1], [0], [0], [1], [0, 0, 1, 1], [], []>} : vector<8x16xbf16>, vector<16x64xbf16>, vector<8x64xf32> -> vector<8x64xf32>
    %c0_3 = arith.constant 0 : index
    %c0_4 = arith.constant 0 : index
    %4 = vector.load %arg3[%c0_3, %c0_4] : memref<8x64xf32, #tpu.memory_space<vmem>>, vector<8x64xf32>
    tpu.vector_store %arg3[%c0_3, %c0_4], %3 {strides = array<i32>} : memref<8x64xf32, #tpu.memory_space<vmem>>, vector<8x64xf32>,
    return
  }
  func.func @transform_0(%arg0: i32) -> (i32, i32) {
    %c0_i32 = arith.constant 0 : i32
    %c0_i32_0 = arith.constant 0 : i32
    return %arg0, %c0_i32 : i32, i32
  }
  func.func @transform_1(%arg0: i32) -> (i32, i32) {
    %c0_i32 = arith.constant 0 : i32
    %c0_i32_0 = arith.constant 0 : i32
    %c0_i32_1 = arith.constant 0 : i32
    return %c0_i32, %c0_i32_0 : i32, i32
  }
  func.func @transform_2(%arg0: i32) -> (i32, i32) {
    %c0_i32 = arith.constant 0 : i32
    %c0_i32_0 = arith.constant 0 : i32
    return %arg0, %c0_i32 : i32, i32
  }
}

</mosaic_0001>

<llo_original>
// kernel: tpu_custom_call.1
$region0: #{tpu_custom_call.1}
  #allocation0 [shape = 'u32[]', space=smem, size = 0x4, offset = 0x4, fixed_abs, tag = 'smem constant byte address 0x4 - core index']
  #allocation1 [shape = 'u32[144,128]{1,0:T(1,128)}', space=vmem, size = 0x12000, scoped, tag = 'internal scratch']
  %s0 = inlined_call_operand.hbm [shape: f32[16,16], index: 0, kind: input, shape index: {}]
  %s1 = inlined_call_operand.hbm [shape: bf16[16,64], index: 1, kind: input, shape index: {}]
  %s2 = inlined_call_operand.hbm [shape: f32[16,64], index: 2, kind: output, shape index: {}]
  %s3 = sld [smem:[#allocation0]]
  $region49: #{tpu_custom_call.1} parent=0
    _
  %s5 = ssub.s32 1, %s3
  %s6 = scalar_select 0, %s5, %s3
  $region1: #{tpu_custom_call.1} parent=0
    #allocation2 [shape = 'u8[8192]{0}', space=vmem, size = 0x2000, scoped, tag = 'input window, operand 0']
    #allocation3 [shape = 's32[2]{0}', space=sflag, size = 0x8, scoped, tag = 'scoped memory for tpu_custom_call.1']
    #allocation4 [shape = 's32[2]{0}', space=sflag, size = 0x8, scoped, tag = 'scoped memory for tpu_custom_call.1']
    #allocation5 [shape = 'u8[4096]{0}', space=vmem, size = 0x1000, scoped, tag = 'input window, operand 1, single buffered']
    #allocation6 [shape = 's32[1]{0}', space=sflag, size = 0x4, scoped, tag = 'scoped memory for tpu_custom_call.1']
    #allocation7 [shape = 'u8[8192]{0}', space=vmem, size = 0x2000, scoped, tag = 'output window, operand 0']
    %7 = vsyncpa [#allocation3], 0
    %s8 = scalar_lea.sflag [#allocation3], 1
    %9 = vsyncpa %s8, 0
    %10 = vsyncpa [#allocation6], 0
    %11 = vsyncpa [#allocation4], 0
    %s12 = scalar_lea.sflag [#allocation4], 1
    %13 = vsyncpa %s12, 0
    loop: start=0, step=1, limit=4
    $region2: #{tpu_custom_call.1} parent=1 // loop_pre_header
      _
    $region3: #{tpu_custom_call.1} parent=1 // loop_header
      %s15 = sphi 0, %s19
      %p16 = scmp.ge.s32.totalorder %s15, 4
      %s25 = sphi 0, %s27
      %s28 = sphi 0, %s25
      %s29 = sphi 0, %s28
      %s45 = sphi 0, %s29
      %s49 = sphi 0, %s49
      %s51 = sphi 0, %s49
      %s52 = sphi 0, %s51
      %s66 = sphi 0, %s52
      %s72 = sphi 0, %s74
      %s75 = sphi 0, %s72
      %s76 = sphi 0, %s75
      %s92 = sphi 0, %s76
    $region4: #{tpu_custom_call.1} parent=1 // loop_header_branch
      %18 = sbr.rel (%p16) target = $region8
    $region5: #{tpu_custom_call.1} parent=1 // loop_body
      %s20 = ssub.s32 %s15, 1
      %s21 = ssub.s32 %s15, 2
      %s22 = sadd.s32 %s15, 1
      %s23 = ssub.s32 %s15, %s22
      %p24 = scmp.eq.s32.totalorder %s23, 0
      %s26 = sadd.s32 %s25, 1
      %s27 = scalar_select %p24, %s25, %s26
      %p30 = pneg %p24
      %p31 = scmp.eq.s32.totalorder %s15, 1
      %p32 = por %p30, %p31
      %p33 = scmp.ne.s32.totalorder %s25, %s28
      %p34 = scmp.eq.s32.totalorder %s15, 0
      %p35 = por %p33, %p34
      %p36 = scmp.ne.s32.totalorder %s25, %s28
      %p37 = scmp.eq.s32.totalorder %s20, 1
      %p38 = por %p36, %p37
      %p39 = scmp.ne.s32.totalorder %s28, %s29
      %p40 = scmp.eq.s32.totalorder %s20, 0
      %p41 = por %p39, %p40
      %p42 = scmp.ne.s32.totalorder %s28, %s29
      %p43 = scmp.eq.s32.totalorder %s21, 1
      %p44 = por %p42, %p43
      %p46 = scmp.ne.s32.totalorder %s29, %s45
      %p47 = scmp.eq.s32.totalorder %s21, 0
      %p48 = por %p46, %p47
      %s50 = sadd.s32 %s49, 1
      %p53 = scmp.eq.s32.totalorder %s15, 1
      %p54 = scmp.ne.s32.totalorder %s49, %s51
      %p55 = scmp.eq.s32.totalorder %s15, 0
      %p56 = por %p54, %p55
      %p57 = scmp.ne.s32.totalorder %s49, %s51
      %p58 = scmp.eq.s32.totalorder %s20, 1
      %p59 = por %p57, %p58
      %p60 = scmp.ne.s32.totalorder %s51, %s52
      %p61 = scmp.eq.s32.totalorder %s20, 0
      %p62 = por %p60, %p61
      %p63 = scmp.ne.s32.totalorder %s51, %s52
      %p64 = scmp.eq.s32.totalorder %s21, 1
      %p65 = por %p63, %p64
      %p67 = scmp.ne.s32.totalorder %s52, %s66
      %p68 = scmp.eq.s32.totalorder %s21, 0
      %p69 = por %p67, %p68
      %s70 = ssub.s32 %s15, %s22
      %p71 = scmp.eq.s32.totalorder %s70, 0
      %s73 = sadd.s32 %s72, 1
      %s74 = scalar_select %p71, %s72, %s73
      %p77 = pneg %p71
      %p78 = scmp.eq.s32.totalorder %s15, 1
      %p79 = por %p77, %p78
      %p80 = scmp.ne.s32.totalorder %s72, %s75
      %p81 = scmp.eq.s32.totalorder %s15, 0
      %p82 = por %p80, %p81
      %p83 = scmp.ne.s32.totalorder %s72, %s75
      %p84 = scmp.eq.s32.totalorder %s20, 1
      %p85 = por %p83, %p84
      %p86 = scmp.ne.s32.totalorder %s75, %s76
      %p87 = scmp.eq.s32.totalorder %s20, 0
      %p88 = por %p86, %p87
      %p89 = scmp.ne.s32.totalorder %s75, %s76
      %p90 = scmp.eq.s32.totalorder %s21, 1
      %p91 = por %p89, %p90
      %p93 = scmp.ne.s32.totalorder %s76, %s92
      %p94 = scmp.eq.s32.totalorder %s21, 0
      %p95 = por %p93, %p94
      %p96 = scmp.le.s32.totalorder 1, %s15
      %p97 = scmp.lt.s32.totalorder %s15, 3
      %p98 = pnand %p96, %p97
      %p99 = pneg %p98
      // Predicated region
      $region9: #{tpu_custom_call.1} parent=5 // pred_check
        _
      $region10: #{tpu_custom_call.1} parent=5 // pred_check_branch
        %101 = sbr.rel (%p98) target = $region12
      $region11: #{tpu_custom_call.1} parent=5 // pred_region
        %s102 = ssub.s32 %s15, 1
        // Predicated region
        $region13: #{tpu_custom_call.1} parent=11 // pred_check
          %p103 = pneg %p62
        $region14: #{tpu_custom_call.1} parent=11 // pred_check_branch
          %105 = sbr.rel (%p103) target = $region16
        $region15: #{tpu_custom_call.1} parent=11 // pred_region
          %s107 = ssub.s32 128, 128
          %108 = vsyncadd [#allocation6], %s107
          %s109 = sshll.u32 [#allocation5], 4
          %s110 = int_to_ptr.vmem [resolvable:$true] %s109
          %115 = dma.hbm_to_vmem [thread:$0]  %s1, 128, %s110, [#allocation6], 64, 64, 4
        $region16: #{tpu_custom_call.1} parent=11 // pred_fallthru
          _
      $region12: #{tpu_custom_call.1} parent=5 // pred_fallthru
        _
      %p116 = scmp.lt.s32.totalorder %s15, 2
      // Predicated region
      $region17: #{tpu_custom_call.1} parent=5 // pred_check
        %p117 = pneg %p116
      $region18: #{tpu_custom_call.1} parent=5 // pred_check_branch
        %119 = sbr.rel (%p117) target = $region20
      $region19: #{tpu_custom_call.1} parent=5 // pred_region
        // Predicated region
        $region21: #{tpu_custom_call.1} parent=19 // pred_check
          %p120 = pneg %p35
        $region22: #{tpu_custom_call.1} parent=19 // pred_check_branch
          %122 = sbr.rel (%p120) target = $region24
        $region23: #{tpu_custom_call.1} parent=19 // pred_region
          %s123 = sand.u32 %s25, 1
          %s124 = scalar_lea.sflag [#allocation3], %s123
          %s125 = sand.u32 %s25, 1
          %s126 = smul.addr %s125, 8
          %s127 = scalar_lea.vmem [#allocation2], %s126
          %s129 = ssub.s32 128, 128
          %130 = vsyncadd %s124, %s129
          %s131 = smul.addr %s15, 128
          %s132 = scalar_lea.hbm %s0, %s131
          %s134 = sshll.u32 %s127, 4
          %s135 = int_to_ptr.vmem [resolvable:$true] %s134
          %137 = dma.hbm_to_vmem [thread:$0]  %s132, 128, %s135, %s124
        $region24: #{tpu_custom_call.1} parent=19 // pred_fallthru
          _
      $region20: #{tpu_custom_call.1} parent=5 // pred_fallthru
        _
      %p138 = scmp.le.s32.totalorder 1, %s15
      %p139 = scmp.lt.s32.totalorder %s15, 3
      %p140 = pnand %p138, %p139
      %p141 = pneg %p140
      // Predicated region
      $region25: #{tpu_custom_call.1} parent=5 // pred_check
        _
      $region26: #{tpu_custom_call.1} parent=5 // pred_check_branch
        %143 = sbr.rel (%p140) target = $region28
      $region27: #{tpu_custom_call.1} parent=5 // pred_region
        %s144 = ssub.s32 %s15, 1
        %s145 = sand.u32 %s28, 1
        %s146 = scalar_lea.sflag [#allocation3], %s145
        %s147 = sand.u32 %s28, 1
        %s148 = smul.addr %s147, 8
        %s149 = scalar_lea.vmem [#allocation2], %s148
        // Predicated region
        $region29: #{tpu_custom_call.1} parent=27 // pred_check
          %p150 = pneg %p41
        $region30: #{tpu_custom_call.1} parent=27 // pred_check_branch
          %152 = sbr.rel (%p150) target = $region32
        $region31: #{tpu_custom_call.1} parent=27 // pred_region
          %153 = dma.done %s146, 128
        $region32: #{tpu_custom_call.1} parent=27 // pred_fallthru
          _
        // Predicated region
        $region33: #{tpu_custom_call.1} parent=27 // pred_check
          %p154 = pneg %p62
        $region34: #{tpu_custom_call.1} parent=27 // pred_check_branch
          %156 = sbr.rel (%p154) target = $region36
        $region35: #{tpu_custom_call.1} parent=27 // pred_region
          %157 = dma.done [#allocation6], 128
        $region36: #{tpu_custom_call.1} parent=27 // pred_fallthru
          _
        %s158 = sand.u32 %s28, 1
        %s159 = scalar_lea.sflag [#allocation3], %s158
        %s160 = sand.u32 %s28, 1
        %s161 = smul.addr %s160, 8
        %s162 = scalar_lea.vmem [#allocation2], %s161
        %p163 = pneg %p41
        %p164 = pneg %p38
        %p165 = pneg %p62
        %p166 = pneg %p59
        %p167 = pneg %p88
        %p168 = pneg %p85
        %s169 = sand.u32 %s75, 1
        %s170 = scalar_lea.sflag [#allocation4], %s169
        %s171 = sand.u32 %s75, 1
        %s172 = smul.addr %s171, 8
        %s173 = scalar_lea.vmem [#allocation7], %s172
        %v175 = vld [vmem:[%s149] sm:$0xff]
        %v176 = vpack.c.bf16 %v175, %v175
        %v177 = vld [vmem:[#allocation5] sm:$0xf]
        %v178 = vld [vmem:[#allocation5 + $0x4] sm:$0xf]
        %v181 = vunpack.c.l.b16 %v177
        %v182 = vunpack.c.l.b16 %v178
        %v183 = vpack.c.b16 %v182, %v181
        %vm185 = vcmask 130048
        %v187 = vsel %vm185, %v176, 0
        %189 = vmatprep.subr.bf16.mxu0 0
        %190 = vmatpush1.bf16.msra.mxu0 0
        %191 = vmatprep.subr.bf16.mxu0 0
        %192 = vmatpush1.bf16.msra.mxu0 0
        %193 = vmatprep.subr.bf16.mxu0 0
        %194 = vmatpush1.bf16.msra.mxu0 0
        %195 = vmatprep.subr.bf16.mxu0 0
        %196 = vmatpush1.bf16.msra.mxu0 0
        %197 = vmatprep.subr.bf16.mxu0 0
        %198 = vmatpush1.bf16.msra.mxu0 0
        %199 = vmatprep.subr.bf16.mxu0 0
        %200 = vmatpush1.bf16.msra.mxu0 0
        %201 = vmatprep.subr.bf16.mxu0 0
        %202 = vmatpush1.bf16.msra.mxu0 0
        %203 = vmatprep.subr.bf16.mxu0 0
        %204 = vmatpush1.bf16.msra.mxu0 %v183
        %205 = vmatprep.subr.bf16.mxu0 0
        %206 = vmatpush2.bf16.msra.mxu0 0
        %207 = vmatprep.subr.bf16.mxu0 0
        %208 = vmatpush2.bf16.msra.mxu0 0
        %209 = vmatprep.subr.bf16.mxu0 0
        %210 = vmatpush2.bf16.msra.mxu0 0
        %211 = vmatprep.subr.bf16.mxu0 0
        %212 = vmatpush2.bf16.msra.mxu0 0
        %213 = vmatprep.subr.bf16.mxu0 0
        %214 = vmatpush2.bf16.msra.mxu0 0
        %215 = vmatprep.subr.bf16.mxu0 0
        %216 = vmatpush2.bf16.msra.mxu0 0
        %217 = vmatprep.subr.bf16.mxu0 0
        %218 = vmatpush2.bf16.msra.mxu0 0
        %219 = vmatprep.subr.bf16.mxu0 0
        %220 = vmatpush2.bf16.msra.mxu0 0
        %221 = vmatprep.mubr.bf16.mxu0 0
        %222 = vmatmul.mubr.bf16.gmra.mxu0 %v187
        %v223 = vpop.f32.mrf.mxu0
        %v224 = vadd.f32 0.0, %v223
        %v225 = vpop.f32.mrf.mxu0
        %v226 = vpop.f32.mrf.mxu0
        %v227 = vpop.f32.mrf.mxu0
        %228 = vdwg.mxu0
        %vm229 = vcmask 523264
        %230 = vst.msk [vmem:[%s173] sm:$0xff] %vm229, %v224
        %s231 = sand.u32 %s75, 1
        %s232 = scalar_lea.sflag [#allocation4], %s231
        %s233 = sand.u32 %s75, 1
        %s234 = smul.addr %s233, 8
        %s235 = scalar_lea.vmem [#allocation7], %s234
        // Predicated region
        $region37: #{tpu_custom_call.1} parent=27 // pred_check
          %p236 = pneg %p85
        $region38: #{tpu_custom_call.1} parent=27 // pred_check_branch
          %238 = sbr.rel (%p236) target = $region40
        $region39: #{tpu_custom_call.1} parent=27 // pred_region
          %s240 = ssub.s32 128, 128
          %241 = vsyncadd %s232, %s240
          %s242 = smul.addr %s20, 128
          %s243 = scalar_lea.hbm %s2, %s242
          %s245 = sshll.u32 %s235, 4
          %s246 = int_to_ptr.vmem [resolvable:$true] %s245
          %248 = dma.vmem_to_hbm [thread:$0]  %s246, 128, %s243, %s232
        $region40: #{tpu_custom_call.1} parent=27 // pred_fallthru
          _
      $region28: #{tpu_custom_call.1} parent=5 // pred_fallthru
        _
      %p249 = scmp.le.s32.totalorder 2, %s15
      // Predicated region
      $region41: #{tpu_custom_call.1} parent=5 // pred_check
        %p250 = pneg %p249
      $region42: #{tpu_custom_call.1} parent=5 // pred_check_branch
        %252 = sbr.rel (%p250) target = $region44
      $region43: #{tpu_custom_call.1} parent=5 // pred_region
        %s253 = ssub.s32 %s15, 2
        // Predicated region
        $region45: #{tpu_custom_call.1} parent=43 // pred_check
          %p254 = pneg %p91
        $region46: #{tpu_custom_call.1} parent=43 // pred_check_branch
          %256 = sbr.rel (%p254) target = $region48
        $region47: #{tpu_custom_call.1} parent=43 // pred_region
          %s257 = sand.u32 %s76, 1
          %s258 = scalar_lea.sflag [#allocation4], %s257
          %s259 = sand.u32 %s76, 1
          %s260 = smul.addr %s259, 8
          %s261 = scalar_lea.vmem [#allocation7], %s260
          %262 = dma.done %s258, 128
        $region48: #{tpu_custom_call.1} parent=43 // pred_fallthru
          _
      $region44: #{tpu_custom_call.1} parent=5 // pred_fallthru
        _
    $region6: #{tpu_custom_call.1} parent=1 // loop_footer
      %s19 = sadd.s32 1, %s15
    $region7: #{tpu_custom_call.1} parent=1 // loop_footer_branch
      %14 = sbr.rel target = $region3
    $region8: #{tpu_custom_call.1} parent=1 // loop_exit
      _
    %263 = vsyncpa [#allocation3], 1
    %s264 = scalar_lea.sflag [#allocation3], 1
    %265 = vsyncpa %s264, 1
    %266 = vsyncpa [#allocation6], 1
    %267 = vsyncpa [#allocation4], 1
    %s268 = scalar_lea.sflag [#allocation4], 1
    %269 = vsyncpa %s268, 1

</llo_original>
